<compile_context>
chip_gen: v7x
topology: tpu7x:2x2x1
jax: 0.10.0
libtpu: 0.0.40
codegen_flags: <defaults>
</compile_context>

<pallas_src>
import functools

import jax
import jax.numpy as jnp
from jax.experimental import pallas as pl
from jax.experimental.pallas import tpu as pltpu

GAMMA = 1.5
ALPHA = 0.25

LANE = 128
SUBLANE = 8
BLOCK_ROWS_MAX = 4096  # (4096,128) f32 = 2 MiB/tile; 2 inputs x 2 bufs = 8 MiB VMEM


def _round_up(x, m):
    return -(-x // m) * m


def _qfocal_kernel(pred_ref, true_ref, out_ref, *, gamma, alpha, n_total,
                   block_rows, n_inner, n_tiles, needs_mask):
    o = pl.program_id(0)          # "parallel" (megacore) axis
    i = pl.program_id(1)          # "arbitrary" reduction axis (output resident)
    tile_id = o * n_inner + i

    @pl.when(i == 0)
    def _():
        out_ref[...] = jnp.zeros_like(out_ref)

    x = pred_ref[...].astype(jnp.float32)
    y = true_ref[...].astype(jnp.float32)

    # Numerically-stable BCE-with-logits; reuse e = exp(-|x|) for the sigmoid
    # so only one exp is issued per element.
    e = jnp.exp(-jnp.abs(x))
    bce = jnp.maximum(x, 0.0) - x * y + jnp.log1p(e)
    inv = 1.0 / (1.0 + e)
    p = jnp.where(x >= 0.0, inv, e * inv)              # sigmoid(x)

    # alpha_factor = y*alpha + (1-y)*(1-alpha), folded into a single FMA.
    alpha_factor = (1.0 - alpha) + y * (2.0 * alpha - 1.0)
    m = jnp.abs(y - p)
    if gamma == 1.5:
        modulating = m * jnp.sqrt(m)                   # m**1.5 without pow (exp+log)
    else:
        modulating = m ** gamma

    loss = bce * alpha_factor * modulating

    def _accumulate(vals):
        # (block_rows,128) -> (block_rows/8, 8, 128): cross-vreg VPU adds only,
        # accumulated into the resident (1,8,128) slab for this outer index.
        out_ref[...] += vals.reshape(-1, SUBLANE, LANE).sum(axis=0)[None]

    if not needs_mask:
        _accumulate(loss)
    else:
        full_rows = n_total // LANE            # number of fully-valid 128-lane rows
        rem = n_total % LANE                   # valid lanes in row `full_rows`
        is_edge = tile_id >= n_tiles - 1       # only edge / overflow tiles mask

        @pl.when(jnp.logical_not(is_edge))
        def _():
            _accumulate(loss)

        @pl.when(is_edge)
        def _():
            row = jax.lax.broadcasted_iota(jnp.int32, loss.shape, 0)
            grow = tile_id * block_rows + row
            mask = grow < full_rows
            if rem:
                lane = jax.lax.broadcasted_iota(jnp.int32, loss.shape, 1)
                mask = mask | ((grow == full_rows) & (lane < rem))
            # Garbage (incl. NaN) in out-of-range rows is never selected.
            _accumulate(jnp.where(mask, loss, 0.0))


def qfocal_loss(pred, true, gamma=GAMMA, alpha=ALPHA, reduction="mean"):
    """QFocalLoss(nn.BCEWithLogitsLoss()) forward. Returns scalar f32 loss."""
    assert pred.shape == true.shape
    n_total = pred.size

    rows = -(-n_total // LANE)                         # ceil: 128-lane rows
    pad = rows * LANE - n_total                        # lane-alignment pad only
    block_rows = min(BLOCK_ROWS_MAX, _round_up(rows, SUBLANE))
    n_tiles = -(-rows // block_rows)
    n_outer = 2 if n_tiles >= 2 else 1                 # one partial slab per core (v7x)
    n_inner = -(-n_tiles // n_outer)
    coverage = n_outer * n_inner * block_rows * LANE
    needs_mask = coverage != n_total

    pred_flat = pred.reshape(-1)
    true_flat = true.reshape(-1)
    if pad:
        # TODO(synk): lane-unaligned sizes force one padded copy of the inputs;
        # sizes divisible by 128 (the common YOLO case) take the zero-copy path.
        pred_flat = jnp.pad(pred_flat, (0, pad))
        true_flat = jnp.pad(true_flat, (0, pad))
    pred2d = pred_flat.reshape(rows, LANE)
    true2d = true_flat.reshape(rows, LANE)

    last_tile = n_tiles - 1

    def in_map(o, i):
        # Clamp so over-covering grid points re-read the last (fully masked) block
        # instead of issuing an out-of-range window.
        return (jnp.minimum(o * n_inner + i, last_tile), 0)

    kernel = functools.partial(
        _qfocal_kernel, gamma=gamma, alpha=alpha, n_total=n_total,
        block_rows=block_rows, n_inner=n_inner, n_tiles=n_tiles,
        needs_mask=needs_mask)

    partials = pl.pallas_call(
        kernel,
        out_shape=jax.ShapeDtypeStruct((n_outer, SUBLANE, LANE), jnp.float32),
        grid_spec=pltpu.PrefetchScalarGridSpec(
            num_scalar_prefetch=0,
            grid=(n_outer, n_inner),
            in_specs=[
                pl.BlockSpec((block_rows, LANE), in_map),
                pl.BlockSpec((block_rows, LANE), in_map),
            ],
            out_specs=pl.BlockSpec((1, SUBLANE, LANE), lambda o, i: (o, 0, 0)),
        ),
        compiler_params=pltpu.CompilerParams(
            dimension_semantics=("parallel", "arbitrary")),
    )(pred2d, true2d)

    total = jnp.sum(partials)          # tiny (n_outer,8,128) final reduce in XLA
    if reduction == "mean":
        return total / jnp.float32(n_total)
    elif reduction == "sum":
        return total
    # TODO(synk): reduction='none' (elementwise output) not implemented; the
    # default BCEWithLogitsLoss wrapped by QFocalLoss uses reduction='mean'.
    raise NotImplementedError(f"reduction={reduction!r}")


def _qfocal_ref(pred, true, gamma=GAMMA, alpha=ALPHA):
    x = pred.astype(jnp.float32)
    y = true.astype(jnp.float32)
    bce = jnp.maximum(x, 0.0) - x * y + jnp.log1p(jnp.exp(-jnp.abs(x)))
    p = jax.nn.sigmoid(x)
    af = y * alpha + (1.0 - y) * (1.0 - alpha)
    mf = jnp.abs(y - p) ** gamma
    return jnp.mean(bce * af * mf)


if __name__ == "__main__":
    key = jax.random.PRNGKey(0)
    k1, k2 = jax.random.split(key)
    # NCHW inputs, as the PyTorch module would receive; quality (soft) targets
    # in [0,1] exercise the QFocal |true - sigmoid(pred)|**gamma term properly.
    pred = jax.random.normal(k1, (2, 4, 16, 16), dtype=jnp.float32)
    true = jax.random.uniform(k2, (2, 4, 16, 16), dtype=jnp.float32)

    out = qfocal_loss(pred, true)
    out = jax.block_until_ready(out)

    ref = _qfocal_ref(pred, true)
    assert jnp.allclose(out, ref, rtol=1e-5, atol=1e-6), (out, ref)
    print("KERNEL_OK")
</pallas_src>

<mosaic_0001>
module attributes {stable_mosaic.version = 11 : i64} {
  func.func @_qfocal_kernel(%arg0: i32, %arg1: i32, %arg2: memref<16x128xf32, #tpu.memory_space<vmem>>, %arg3: memref<16x128xf32, #tpu.memory_space<vmem>>, %arg4: memref<1x8x128xf32, #tpu.memory_space<vmem>>) attributes {dimension_semantics = [#tpu.dimension_semantics<parallel>, #tpu.dimension_semantics<arbitrary>], iteration_bounds = array<i64: 1, 1>, scalar_prefetch = 0 : i64, scratch_operands = 0 : i64, tpu.core_type = #tpu.core_type<tc>, window_params = [{transform_indices = @transform_0, window_bounds = array<i64: 16, 128>}, {transform_indices = @transform_1, window_bounds = array<i64: 16, 128>}, {transform_indices = @transform_2, window_bounds = array<i64: 1, 8, 128>}]} {
    %c0_i32 = arith.constant 0 : i32
    %0 = arith.cmpi eq, %arg1, %c0_i32 : i32
    %1 = arith.extui %0 : i1 to i32
    %c0_i32_0 = arith.constant 0 : i32
    %2 = arith.cmpi ne, %1, %c0_i32_0 : i32
    scf.if %2 {
      %cst_17 = arith.constant 0.000000e+00 : f32
      %39 = vector.broadcast %cst_17 : f32 to vector<1x8x128xf32>
      %c0_18 = arith.constant 0 : index
      %c0_19 = arith.constant 0 : index
      %c0_20 = arith.constant 0 : index
      %40 = vector.load %arg4[%c0_18, %c0_19, %c0_20] : memref<1x8x128xf32, #tpu.memory_space<vmem>>, vector<1x8x128xf32>
      tpu.vector_store %arg4[%c0_18, %c0_19, %c0_20], %39 {strides = array<i32>} : memref<1x8x128xf32, #tpu.memory_space<vmem>>, vector<1x8x128xf32>,
    } else {
    }
    %c0 = arith.constant 0 : index
    %c0_1 = arith.constant 0 : index
    %3 = vector.load %arg2[%c0, %c0_1] : memref<16x128xf32, #tpu.memory_space<vmem>>, vector<16x128xf32>
    %c0_2 = arith.constant 0 : index
    %c0_3 = arith.constant 0 : index
    %4 = vector.load %arg3[%c0_2, %c0_3] : memref<16x128xf32, #tpu.memory_space<vmem>>, vector<16x128xf32>
    %5 = math.absf %3 : vector<16x128xf32>
    %cst = arith.constant 0.000000e+00 : f32
    %6 = vector.broadcast %cst : f32 to vector<16x128xf32>
    %7 = arith.subf %6, %5 : vector<16x128xf32>
    %8 = math.exp %7 : vector<16x128xf32>
    %cst_4 = arith.constant 0.000000e+00 : f32
    %9 = vector.broadcast %cst_4 : f32 to vector<16x128xf32>
    %10 = arith.maximumf %3, %9 : vector<16x128xf32>
    %11 = arith.mulf %3, %4 : vector<16x128xf32>
    %12 = arith.subf %10, %11 : vector<16x128xf32>
    %13 = math.log1p %8 : vector<16x128xf32>
    %14 = arith.addf %12, %13 : vector<16x128xf32>
    %cst_5 = arith.constant 1.000000e+00 : f32
    %15 = vector.broadcast %cst_5 : f32 to vector<16x128xf32>
    %16 = arith.addf %15, %8 : vector<16x128xf32>
    %cst_6 = arith.constant 1.000000e+00 : f32
    %17 = vector.broadcast %cst_6 : f32 to vector<16x128xf32>
    %18 = arith.divf %17, %16 : vector<16x128xf32>
    %cst_7 = arith.constant 0.000000e+00 : f32
    %19 = vector.broadcast %cst_7 : f32 to vector<16x128xf32>
    %20 = arith.cmpf oge, %3, %19 : vector<16x128xf32>
    %21 = arith.mulf %8, %18 : vector<16x128xf32>
    %22 = arith.select %20, %18, %21 : vector<16x128xi1>, vector<16x128xf32>
    %cst_8 = arith.constant -5.000000e-01 : f32
    %23 = vector.broadcast %cst_8 : f32 to vector<16x128xf32>
    %24 = arith.mulf %4, %23 : vector<16x128xf32>
    %cst_9 = arith.constant 7.500000e-01 : f32
    %25 = vector.broadcast %cst_9 : f32 to vector<16x128xf32>
    %26 = arith.addf %25, %24 : vector<16x128xf32>
    %27 = arith.subf %4, %22 : vector<16x128xf32>
    %28 = math.absf %27 : vector<16x128xf32>
    %29 = math.sqrt %28 : vector<16x128xf32>
    %30 = arith.mulf %28, %29 : vector<16x128xf32>
    %31 = arith.mulf %14, %26 : vector<16x128xf32>
    %32 = arith.mulf %31, %30 : vector<16x128xf32>
    %c0_10 = arith.constant 0 : index
    %c0_11 = arith.constant 0 : index
    %c0_12 = arith.constant 0 : index
    %33 = vector.load %arg4[%c0_10, %c0_11, %c0_12] : memref<1x8x128xf32, #tpu.memory_space<vmem>>, vector<1x8x128xf32>
    %34 = vector.shape_cast %32 : vector<16x128xf32> to vector<2x8x128xf32>
    %cst_13 = arith.constant dense<0.000000e+00> : vector<8x128xf32>
    %35 = vector.multi_reduction <add>, %34, %cst_13 [0] : vector<2x8x128xf32> to vector<8x128xf32>
    %36 = vector.shape_cast %35 : vector<8x128xf32> to vector<1x8x128xf32>
    %37 = arith.addf %33, %36 : vector<1x8x128xf32>
    %c0_14 = arith.constant 0 : index
    %c0_15 = arith.constant 0 : index
    %c0_16 = arith.constant 0 : index
    %38 = vector.load %arg4[%c0_14, %c0_15, %c0_16] : memref<1x8x128xf32, #tpu.memory_space<vmem>>, vector<1x8x128xf32>
    tpu.vector_store %arg4[%c0_14, %c0_15, %c0_16], %37 {strides = array<i32>} : memref<1x8x128xf32, #tpu.memory_space<vmem>>, vector<1x8x128xf32>,
    return
  }
  func.func @transform_0(%arg0: i32, %arg1: i32) -> (i32, i32) {
    %c1_i32 = arith.constant 1 : i32
    %0 = arith.muli %arg0, %c1_i32 : i32
    %1 = arith.addi %0, %arg1 : i32
    %c0_i32 = arith.constant 0 : i32
    %2 = arith.minsi %1, %c0_i32 : i32
    %c0_i32_0 = arith.constant 0 : i32
    %c0_i32_1 = arith.constant 0 : i32
    return %2, %c0_i32_0 : i32, i32
  }
  func.func @transform_1(%arg0: i32, %arg1: i32) -> (i32, i32) {
    %c1_i32 = arith.constant 1 : i32
    %0 = arith.muli %arg0, %c1_i32 : i32
    %1 = arith.addi %0, %arg1 : i32
    %c0_i32 = arith.constant 0 : i32
    %2 = arith.minsi %1, %c0_i32 : i32
    %c0_i32_0 = arith.constant 0 : i32
    %c0_i32_1 = arith.constant 0 : i32
    return %2, %c0_i32_0 : i32, i32
  }
  func.func @transform_2(%arg0: i32, %arg1: i32) -> (i32, i32, i32) {
    %c0_i32 = arith.constant 0 : i32
    %c0_i32_0 = arith.constant 0 : i32
    %c0_i32_1 = arith.constant 0 : i32
    return %arg0, %c0_i32, %c0_i32_0 : i32, i32, i32
  }
}

</mosaic_0001>

<llo_original>
// kernel: tpu_custom_call.1
$region0: #{tpu_custom_call.1}
  #allocation0 [shape = 'u32[]', space=smem, size = 0x4, offset = 0x4, fixed_abs, tag = 'smem constant byte address 0x4 - core index']
  #allocation1 [shape = 'u32[144,128]{1,0:T(1,128)}', space=vmem, size = 0x12000, scoped, tag = 'internal scratch']
  %s0 = inlined_call_operand.hbm [shape: f32[16,128], index: 0, kind: input, shape index: {}]
  %s1 = inlined_call_operand.hbm [shape: f32[16,128], index: 1, kind: input, shape index: {}]
  %s2 = inlined_call_operand.hbm [shape: f32[1,8,128], index: 2, kind: output, shape index: {}]
  %s3 = sld [smem:[#allocation0]]
  $region30: #{tpu_custom_call.1} parent=0
    _
  %s5 = ssub.s32 1, %s3
  %s6 = scalar_select 0, %s5, %s3
  $region1: #{tpu_custom_call.1} parent=0
    #allocation2 [shape = 'u8[8192]{0}', space=vmem, size = 0x2000, scoped, tag = 'input window, operand 0, single buffered']
    #allocation3 [shape = 's32[1]{0}', space=sflag, size = 0x4, scoped, tag = 'scoped memory for tpu_custom_call.1']
    #allocation4 [shape = 's32[1]{0}', space=sflag, size = 0x4, scoped, tag = 'scoped memory for tpu_custom_call.1']
    #allocation5 [shape = 'u8[8192]{0}', space=vmem, size = 0x2000, scoped, tag = 'input window, operand 1, single buffered']
    #allocation6 [shape = 's32[1]{0}', space=sflag, size = 0x4, scoped, tag = 'scoped memory for tpu_custom_call.1']
    #allocation7 [shape = 'u8[4096]{0}', space=vmem, size = 0x1000, scoped, tag = 'output window, operand 0, single buffered']
    %7 = vsyncpa [#allocation3], 0
    %8 = vsyncpa [#allocation6], 0
    %9 = vsyncpa [#allocation4], 0
    // Predicated region
    $region2: #{tpu_custom_call.1} parent=1 // pred_check
      _
    $region3: #{tpu_custom_call.1} parent=1 // pred_check_branch
      %11 = sbr.rel (0) target = $region5
    $region4: #{tpu_custom_call.1} parent=1 // pred_region
      %s12 = sadd.s32 0, 0
      %p13 = scmp.lt.s32.totalorder %s12, 0
      %s14 = scalar_select %p13, %s12, 0
      %s15 = smul.u32 2, %s14
      %s17 = ssub.s32 256, 256
      %18 = vsyncadd [#allocation3], %s17
      %s19 = smul.addr %s15, 128
      %s20 = scalar_lea.hbm %s0, %s19
      %s21 = sshll.u32 [#allocation2], 4
      %s22 = int_to_ptr.vmem [resolvable:$true] %s21
      %27 = dma.hbm_to_vmem [thread:$0]  %s20, 256, %s22, [#allocation3], 128, 128, 8
    $region5: #{tpu_custom_call.1} parent=1 // pred_fallthru
      _
    // Predicated region
    $region6: #{tpu_custom_call.1} parent=1 // pred_check
      _
    $region7: #{tpu_custom_call.1} parent=1 // pred_check_branch
      %29 = sbr.rel (0) target = $region9
    $region8: #{tpu_custom_call.1} parent=1 // pred_region
      %s30 = sadd.s32 0, 0
      %p31 = scmp.lt.s32.totalorder %s30, 0
      %s32 = scalar_select %p31, %s30, 0
      %s33 = smul.u32 2, %s32
      %s35 = ssub.s32 256, 256
      %36 = vsyncadd [#allocation6], %s35
      %s37 = smul.addr %s33, 128
      %s38 = scalar_lea.hbm %s1, %s37
      %s39 = sshll.u32 [#allocation5], 4
      %s40 = int_to_ptr.vmem [resolvable:$true] %s39
      %45 = dma.hbm_to_vmem [thread:$0]  %s38, 256, %s40, [#allocation6], 128, 128, 8
    $region9: #{tpu_custom_call.1} parent=1 // pred_fallthru
      _
    // Predicated region
    $region10: #{tpu_custom_call.1} parent=1 // pred_check
      _
    $region11: #{tpu_custom_call.1} parent=1 // pred_check_branch
      %47 = sbr.rel (0) target = $region13
    $region12: #{tpu_custom_call.1} parent=1 // pred_region
      %48 = dma.done [#allocation3], 256
    $region13: #{tpu_custom_call.1} parent=1 // pred_fallthru
      _
    // Predicated region
    $region14: #{tpu_custom_call.1} parent=1 // pred_check
      _
    $region15: #{tpu_custom_call.1} parent=1 // pred_check_branch
      %50 = sbr.rel (0) target = $region17
    $region16: #{tpu_custom_call.1} parent=1 // pred_region
      %51 = dma.done [#allocation6], 256
    $region17: #{tpu_custom_call.1} parent=1 // pred_fallthru
      _
    %s52 = sadd.s32 0, 0
    %p53 = scmp.lt.s32.totalorder %s52, 0
    %s54 = scalar_select %p53, %s52, 0
    %s55 = smul.u32 2, %s54
    %s56 = sadd.s32 0, 0
    %p57 = scmp.lt.s32.totalorder %s56, 0
    %s58 = scalar_select %p57, %s56, 0
    %s59 = smul.u32 2, %s58
    %p60 = scmp.eq.s32.totalorder 0, 0
    // Predicated region
    $region18: #{tpu_custom_call.1} parent=1 // pred_check
      %p61 = pneg %p60
    $region19: #{tpu_custom_call.1} parent=1 // pred_check_branch
      %63 = sbr.rel (%p61) target = $region21
    $region20: #{tpu_custom_call.1} parent=1 // pred_region
      %64 = vst [vmem:[#allocation7] sm:$0xff] 0.0
    $region21: #{tpu_custom_call.1} parent=1 // pred_fallthru
      _
    %v65 = vld [vmem:[#allocation2] sm:$0xff]
    %v66 = vld [vmem:[#allocation2 + $0x8] sm:$0xff]
    %v67 = vld [vmem:[#allocation5] sm:$0xff]
    %v68 = vld [vmem:[#allocation5 + $0x8] sm:$0xff]
    %v69 = vand.u32 2147483647, %v65
    %v70 = vand.u32 2147483647, %v66
    %v71 = vsub.f32 0.0, %v69
    %v72 = vsub.f32 0.0, %v70
    %v73 = vmul.f32 %v71, 1.442695
    %v74 = vpow.pop %v73
    %v75 = vmul.f32 %v72, 1.442695
    %v76 = vpow.pop %v75
    %v77 = vmax.f32 %v65, 0.0
    %v78 = vmax.f32 %v66, 0.0
    %v79 = vmul.f32 %v65, %v67
    %v80 = vmul.f32 %v66, %v68
    %v81 = vsub.f32 %v77, %v79
    %v82 = vsub.f32 %v78, %v80
    %v83 = vadd.f32 %v74, 1.0
    %v84 = vlog2.pop %v83
    %v85 = vmul.f32 %v84, 0.6931472
    %v86 = vmul.f32 -0.5, %v74
    %v87 = vadd.f32 %v86, 1.0
    %v88 = vmul.f32 %v87, %v74
    %v89 = vand.u32 2147483647, %v74
    %vm90 = vcmp.lt.f32.partialorder %v89, 0.0004427343
    %v91 = vsel %vm90, %v88, %v85
    %v92 = vadd.f32 %v76, 1.0
    %v93 = vlog2.pop %v92
    %v94 = vmul.f32 %v93, 0.6931472
    %v95 = vmul.f32 -0.5, %v76
    %v96 = vadd.f32 %v95, 1.0
    %v97 = vmul.f32 %v96, %v76
    %v98 = vand.u32 2147483647, %v76
    %vm99 = vcmp.lt.f32.partialorder %v98, 0.0004427343
    %v100 = vsel %vm99, %v97, %v94
    %v101 = vadd.f32 %v81, %v91
    %v102 = vadd.f32 %v82, %v100
    %v103 = vadd.f32 %v74, 1.0
    %v104 = vadd.f32 %v76, 1.0
    %v105 = vrcp.pop %v103
    %v106 = vmul.f32 1.0, %v105
    %v107 = vrcp.pop %v104
    %v108 = vmul.f32 1.0, %v107
    %vm109 = vcmp.ge.f32.partialorder %v65, 0.0
    %vm110 = vcmp.ge.f32.partialorder %v66, 0.0
    %v111 = vmul.f32 %v74, %v106
    %v112 = vmul.f32 %v76, %v108
    %v113 = vsel %vm109, %v106, %v111
    %v114 = vsel %vm110, %v108, %v112
    %v115 = vmul.f32 %v67, -0.5
    %v116 = vmul.f32 %v68, -0.5
    %v117 = vadd.f32 %v115, 0.75
    %v118 = vadd.f32 %v116, 0.75
    %v119 = vsub.f32 %v67, %v113
    %v120 = vsub.f32 %v68, %v114
    %v121 = vand.u32 2147483647, %v119
    %v122 = vand.u32 2147483647, %v120
    %v123 = vrsqrt.pop %v121
    %v124 = vmul.f32 %v121, %v123
    %vm125 = vcmp.eq.f32.partialorder %v121, inf
    %v126 = vsel %vm125, %v121, %v124
    %vm127 = vcmp.eq.f32.partialorder %v121, 0.0
    %v128 = vand.u32 %v121, 2147483648
    %v129 = vsel %vm127, %v128, %v126
    %v130 = vrsqrt.pop %v122
    %v131 = vmul.f32 %v122, %v130
    %vm132 = vcmp.eq.f32.partialorder %v122, inf
    %v133 = vsel %vm132, %v122, %v131
    %vm134 = vcmp.eq.f32.partialorder %v122, 0.0
    %v135 = vand.u32 %v122, 2147483648
    %v136 = vsel %vm134, %v135, %v133
    %v137 = vmul.f32 %v121, %v129
    %v138 = vmul.f32 %v122, %v136
    %v139 = vmul.f32 %v101, %v117
    %v140 = vmul.f32 %v102, %v118
    %v141 = vmul.f32 %v139, %v137
    %v142 = vmul.f32 %v140, %v138
    %v143 = vld [vmem:[#allocation7] sm:$0xff]
    %v144 = vadd.f32 %v141, %v142
    %v145 = vadd.f32 %v143, %v144
    %146 = vst [vmem:[#allocation7] sm:$0xff] %v145
    // Predicated region
    $region22: #{tpu_custom_call.1} parent=1 // pred_check
      _
    $region23: #{tpu_custom_call.1} parent=1 // pred_check_branch
      %148 = sbr.rel (0) target = $region25
    $region24: #{tpu_custom_call.1} parent=1 // pred_region
      %s150 = ssub.s32 128, 128
      %151 = vsyncadd [#allocation4], %s150
      %s153 = sshll.u32 [#allocation7], 4
      %s154 = int_to_ptr.vmem [resolvable:$true] %s153
      %156 = dma.vmem_to_hbm [thread:$0]  %s154, 128, %s2, [#allocation4]
    $region25: #{tpu_custom_call.1} parent=1 // pred_fallthru
      _
    // Predicated region
    $region26: #{tpu_custom_call.1} parent=1 // pred_check
      _
    $region27: #{tpu_custom_call.1} parent=1 // pred_check_branch
      %158 = sbr.rel (0) target = $region29
    $region28: #{tpu_custom_call.1} parent=1 // pred_region
      %159 = dma.done [#allocation4], 128
    $region29: #{tpu_custom_call.1} parent=1 // pred_fallthru
      _
    %160 = vsyncpa [#allocation3], 1
    %161 = vsyncpa [#allocation6], 1
    %162 = vsyncpa [#allocation4], 1

</llo_original>
